<compile_context>
chip_gen: v6e
topology: v6e:2x2x1
jax: 0.10.0
libtpu: 0.0.40
codegen_flags: <defaults>
</compile_context>

<pallas_src>
import jax
import jax.numpy as jnp
from jax import lax
from jax.experimental import pallas as pl
from jax.experimental.pallas import tpu as pltpu


def _round_up(x, m):
    return ((x + m - 1) // m) * m


def _largest_tile(n, cap):
    """Largest multiple of 128 that divides n and is <= cap (n must be a
    multiple of 128)."""
    best = 128
    t = 128
    limit = min(cap, n)
    while t <= limit:
        if n % t == 0:
            best = t
        t += 128
    return best


# --------------------------------------------------------------------------- #
# Shared MLP body: rows -> relu(fc) -> sigmoid(fc2), f32 accumulation.
# --------------------------------------------------------------------------- #
def _mlp_rows(x, w1, b1, w2, b2):
    h1 = jnp.dot(x, w1, preferred_element_type=jnp.float32) + b1
    h1 = jnp.maximum(h1, 0.0)
    h2 = jnp.dot(h1.astype(w2.dtype), w2, preferred_element_type=jnp.float32) + b2
    return jax.nn.sigmoid(h2)
    # TODO(synk): training-mode dropout (pltpu.prng_random_bits mask/scale) is
    # not wired in; the reference module is evaluated with training=False.


# --------------------------------------------------------------------------- #
# Small-N path: one full (N, N) block per batch item (no padding).
# --------------------------------------------------------------------------- #
def _fused_full_kernel(z_ref, w1_ref, b1_ref, w2_ref, b2_ref, adj_ref):
    h2 = _mlp_rows(z_ref[...], w1_ref[...], b1_ref[...], w2_ref[...], b2_ref[...])
    h2c = h2.astype(z_ref.dtype)                 # compute dtype for the MXU
    logits = lax.dot_general(h2c, h2c,
                             dimension_numbers=(((1,), (1,)), ((), ())),
                             preferred_element_type=jnp.float32)
    adj_ref[...] = jax.nn.sigmoid(logits).astype(adj_ref.dtype)


# --------------------------------------------------------------------------- #
# Large-N path: adj[b, i-tile, j-tile] = sigmoid(mlp(z_rows) @ mlp(z_cols)^T)
# --------------------------------------------------------------------------- #
def _fused_tile_kernel(zr_ref, zc_ref, w1_ref, b1_ref, w2_ref, b2_ref, adj_ref):
    w1 = w1_ref[...]
    b1 = b1_ref[...]
    w2 = w2_ref[...]
    b2 = b2_ref[...]
    hr = _mlp_rows(zr_ref[...], w1, b1, w2, b2).astype(zr_ref.dtype)   # (TR, H2)
    hc = _mlp_rows(zc_ref[...], w1, b1, w2, b2).astype(zc_ref.dtype)   # (TC, H2)
    # Contract the last dims directly on the MXU -- no materialized transpose.
    logits = lax.dot_general(hr, hc,
                             dimension_numbers=(((1,), (1,)), ((), ())),
                             preferred_element_type=jnp.float32)       # (TR, TC)
    adj_ref[...] = jax.nn.sigmoid(logits).astype(adj_ref.dtype)


def inner_product_decoder_mlp(z, w1_t, b1, w2_t, b2, *,
                              compute_dtype=None, out_dtype=None,
                              small_n_threshold=512,
                              max_tile_bytes=4 * 1024 * 1024):
    """z: (B, N, Din); w1_t: (Din, H1); b1: (H1,); w2_t: (H1, H2); b2: (H2,).

    compute_dtype: dtype fed to the MXU (f32 accumulation always requested).
      jnp.bfloat16 on v6e/v7x gives ~2x MXU throughput / lighter HBM traffic.
    out_dtype: adj storage dtype.  jnp.bfloat16 halves the dominant writeback.
    Defaults keep f32 for parity with the PyTorch module.
    """
    B, N, Din = z.shape
    H1 = w1_t.shape[1]
    H2 = w2_t.shape[1]
    out_dtype = z.dtype if out_dtype is None else out_dtype
    cdt = z.dtype if compute_dtype is None else compute_dtype
    out_itemsize = jnp.dtype(out_dtype).itemsize
    c_itemsize = jnp.dtype(cdt).itemsize

    zc = z.astype(cdt)
    w1c = w1_t.astype(cdt)
    w2c = w2_t.astype(cdt)
    b1f = b1.reshape(1, H1).astype(jnp.float32)
    b2f = b2.reshape(1, H2).astype(jnp.float32)

    mlp_flops_per_row = 2 * (Din * H1 + H1 * H2)

    # ---------------- Small-N path: full-extent block per batch ------------- #
    if N <= small_n_threshold:
        cost = pl.CostEstimate(
            flops=int(2 * B * N * N * H2 + B * N * mlp_flops_per_row),
            transcendentals=int(B * N * (N + H2)),
            bytes_accessed=int(B * N * Din * c_itemsize
                               + B * N * N * out_itemsize),
        )
        return pl.pallas_call(
            _fused_full_kernel,
            out_shape=jax.ShapeDtypeStruct((B, N, N), out_dtype),
            grid_spec=pltpu.PrefetchScalarGridSpec(
                num_scalar_prefetch=0,
                grid=(B,),
                in_specs=[
                    pl.BlockSpec((None, N, Din), lambda b: (b, 0, 0)),
                    pl.BlockSpec((Din, H1), lambda b: (0, 0)),
                    pl.BlockSpec((1, H1), lambda b: (0, 0)),
                    pl.BlockSpec((H1, H2), lambda b: (0, 0)),
                    pl.BlockSpec((1, H2), lambda b: (0, 0)),
                ],
                out_specs=pl.BlockSpec((None, N, N), lambda b: (b, 0, 0)),
            ),
            compiler_params=pltpu.CompilerParams(
                dimension_semantics=("parallel",),
                vmem_limit_bytes=32 * 1024 * 1024,
            ),
            cost_estimate=cost,
        )(zc, w1c, b1f, w2c, b2f)

    # ---------------- Large-N path: lane-dense tiled adj -------------------- #
    npad = _round_up(N, 128)
    if npad != N:
        # Padded rows produce garbage h2 (finite), cropped at the end.
        zc = jnp.pad(zc, ((0, 0), (0, npad - N), (0, 0)))

    # Big output tiles to amortize the ~0.35 us per-grid-step overhead, capped
    # at max_tile_bytes so the double-buffered working set stays well inside
    # the scoped-VMEM budget on every generation (incl. v7x's 64 MiB part).
    tc = _largest_tile(npad, cap=2048)                       # lane axis (dense)
    tr_cap = min(512, max(128, max_tile_bytes // (tc * out_itemsize)))
    tr = _largest_tile(npad, cap=tr_cap)                     # sublane axis

    n_steps = B * (npad // tr) * (npad // tc)
    cost = pl.CostEstimate(
        flops=int(2 * B * npad * npad * H2
                  + n_steps * (tr + tc) * mlp_flops_per_row),
        transcendentals=int(B * npad * npad + n_steps * (tr + tc) * H2),
        bytes_accessed=int(n_steps * (tr + tc) * Din * c_itemsize
                           + B * npad * npad * out_itemsize),
    )

    adj = pl.pallas_call(
        _fused_tile_kernel,
        out_shape=jax.ShapeDtypeStruct((B, npad, npad), out_dtype),
        grid_spec=pltpu.PrefetchScalarGridSpec(
            num_scalar_prefetch=0,
            grid=(B, npad // tr, npad // tc),
            in_specs=[
                pl.BlockSpec((None, tr, Din), lambda b, i, j: (b, i, 0)),
                pl.BlockSpec((None, tc, Din), lambda b, i, j: (b, j, 0)),
                # Grid-invariant weights/biases (a few KB; constant index_map).
                pl.BlockSpec((Din, H1), lambda b, i, j: (0, 0)),
                pl.BlockSpec((1, H1), lambda b, i, j: (0, 0)),
                pl.BlockSpec((H1, H2), lambda b, i, j: (0, 0)),
                pl.BlockSpec((1, H2), lambda b, i, j: (0, 0)),
            ],
            out_specs=pl.BlockSpec((None, tr, tc), lambda b, i, j: (b, i, j)),
        ),
        compiler_params=pltpu.CompilerParams(
            # Three independent parallel axes: keeps both v7x TensorCores fed
            # while the per-step output block stays bounded.
            dimension_semantics=("parallel", "parallel", "parallel"),
            vmem_limit_bytes=32 * 1024 * 1024,
        ),
        cost_estimate=cost,
    )(zc, zc, w1c, b1f, w2c, b2f)

    if npad != N:
        adj = adj[:, :N, :N]
    return adj


def xavier_uniform(key, fan_out, fan_in, dtype=jnp.float32):
    """Matches torch.nn.init.xavier_uniform_ for a (out, in) Linear weight."""
    bound = (6.0 / (fan_in + fan_out)) ** 0.5
    return jax.random.uniform(key, (fan_out, fan_in), dtype=dtype,
                              minval=-bound, maxval=bound)


if __name__ == "__main__":
    # Small shapes consistent with the module's forward.
    B, N = 2, 8
    input_dim, hidden_dim1, hidden_dim2 = 16, 32, 16

    key = jax.random.PRNGKey(0)
    kz, kw1, kw2, kz2 = jax.random.split(key, 4)

    z = jax.random.normal(kz, (B, N, input_dim), dtype=jnp.float32)

    # Deterministic parameter init (xavier_uniform weights, zero biases).
    w1 = xavier_uniform(kw1, hidden_dim1, input_dim)      # (H1, Din) torch layout
    b1 = jnp.zeros((hidden_dim1,), dtype=jnp.float32)
    w2 = xavier_uniform(kw2, hidden_dim2, hidden_dim1)    # (H2, H1) torch layout
    b2 = jnp.zeros((hidden_dim2,), dtype=jnp.float32)

    def reference(zz):
        h1 = jnp.maximum(zz @ w1.T + b1, 0.0)
        h2 = jax.nn.sigmoid(h1 @ w2.T + b2)
        return jax.nn.sigmoid(jnp.einsum("bnd,bmd->bnm", h2, h2))

    # Pre-transpose weights to (in, out) layout expected by the wrapper.
    adj = inner_product_decoder_mlp(z, w1.T, b1, w2.T, b2)
    adj = jax.block_until_ready(adj)
    assert adj.shape == (B, N, N)
    assert jnp.allclose(adj, reference(z), atol=2e-3), "small-N path mismatch"

    # Also exercise the tiled large-N path (N=600 pads to 640, then cropped).
    N2 = 600
    z2 = jax.random.normal(kz2, (1, N2, input_dim), dtype=jnp.float32)
    adj2 = inner_product_decoder_mlp(z2, w1.T, b1, w2.T, b2)
    adj2 = jax.block_until_ready(adj2)
    assert adj2.shape == (1, N2, N2)
    assert jnp.allclose(adj2, reference(z2), atol=2e-3), "tiled path mismatch"

    print("KERNEL_OK")
</pallas_src>

<mosaic_0001>
module attributes {stable_mosaic.version = 11 : i64} {
  func.func @_fused_full_kernel(%arg0: i32, %arg1: memref<1x8x16xf32, #tpu.memory_space<vmem>>, %arg2: memref<16x32xf32, #tpu.memory_space<vmem>>, %arg3: memref<1x32xf32, #tpu.memory_space<vmem>>, %arg4: memref<32x16xf32, #tpu.memory_space<vmem>>, %arg5: memref<1x16xf32, #tpu.memory_space<vmem>>, %arg6: memref<1x8x8xf32, #tpu.memory_space<vmem>>) attributes {dimension_semantics = [#tpu.dimension_semantics<parallel>], iteration_bounds = array<i64: 2>, scalar_prefetch = 0 : i64, scratch_operands = 0 : i64, tpu.core_type = #tpu.core_type<tc>, window_params = [{transform_indices = @transform_0, window_bounds = array<i64: 1, 8, 16>}, {pipeline_mode = #tpu.pipeline_mode<synchronous>, transform_indices = @transform_1, window_bounds = array<i64: 16, 32>}, {pipeline_mode = #tpu.pipeline_mode<synchronous>, transform_indices = @transform_2, window_bounds = array<i64: 1, 32>}, {pipeline_mode = #tpu.pipeline_mode<synchronous>, transform_indices = @transform_3, window_bounds = array<i64: 32, 16>}, {pipeline_mode = #tpu.pipeline_mode<synchronous>, transform_indices = @transform_4, window_bounds = array<i64: 1, 16>}, {transform_indices = @transform_5, window_bounds = array<i64: 1, 8, 8>}]} {
    %c0 = arith.constant 0 : index
    %c0_0 = arith.constant 0 : index
    %c0_1 = arith.constant 0 : index
    %0 = vector.load %arg1[%c0, %c0_0, %c0_1] : memref<1x8x16xf32, #tpu.memory_space<vmem>>, vector<1x8x16xf32>
    %1 = vector.shape_cast %0 : vector<1x8x16xf32> to vector<8x16xf32>
    %c0_2 = arith.constant 0 : index
    %c0_3 = arith.constant 0 : index
    %2 = vector.load %arg2[%c0_2, %c0_3] : memref<16x32xf32, #tpu.memory_space<vmem>>, vector<16x32xf32>
    %c0_4 = arith.constant 0 : index
    %c0_5 = arith.constant 0 : index
    %3 = vector.load %arg3[%c0_4, %c0_5] : memref<1x32xf32, #tpu.memory_space<vmem>>, vector<1x32xf32>
    %c0_6 = arith.constant 0 : index
    %c0_7 = arith.constant 0 : index
    %4 = vector.load %arg4[%c0_6, %c0_7] : memref<32x16xf32, #tpu.memory_space<vmem>>, vector<32x16xf32>
    %c0_8 = arith.constant 0 : index
    %c0_9 = arith.constant 0 : index
    %5 = vector.load %arg5[%c0_8, %c0_9] : memref<1x16xf32, #tpu.memory_space<vmem>>, vector<1x16xf32>
    %cst = arith.constant dense<0.000000e+00> : vector<8x32xf32>
    %6 = tpu.matmul %1, %2, %cst {dimension_numbers = #tpu.dot_dimension_numbers<[1], [0], [0], [1], [0, 0, 1, 1], [], []>} : vector<8x16xf32>, vector<16x32xf32>, vector<8x32xf32> -> vector<8x32xf32>
    %7 = vector.broadcast %3 : vector<1x32xf32> to vector<8x32xf32>
    %8 = arith.addf %6, %7 : vector<8x32xf32>
    %cst_10 = arith.constant 0.000000e+00 : f32
    %9 = vector.broadcast %cst_10 : f32 to vector<8x32xf32>
    %10 = arith.maximumf %8, %9 : vector<8x32xf32>
    %cst_11 = arith.constant dense<0.000000e+00> : vector<8x16xf32>
    %11 = tpu.matmul %10, %4, %cst_11 {dimension_numbers = #tpu.dot_dimension_numbers<[1], [0], [0], [1], [0, 0, 1, 1], [], []>} : vector<8x32xf32>, vector<32x16xf32>, vector<8x16xf32> -> vector<8x16xf32>
    %12 = vector.broadcast %5 : vector<1x16xf32> to vector<8x16xf32>
    %13 = arith.addf %11, %12 : vector<8x16xf32>
    %14 = arith.negf %13 : vector<8x16xf32>
    %15 = math.exp %14 : vector<8x16xf32>
    %cst_12 = arith.constant 1.000000e+00 : f32
    %16 = vector.broadcast %cst_12 : f32 to vector<8x16xf32>
    %17 = arith.addf %16, %15 : vector<8x16xf32>
    %18 = arith.divf %16, %17 : vector<8x16xf32>
    %cst_13 = arith.constant dense<0.000000e+00> : vector<8x8xf32>
    %19 = tpu.matmul %18, %18, %cst_13 {dimension_numbers = #tpu.dot_dimension_numbers<[1], [1], [0], [0], [0, 0, 1, 0], [], []>} : vector<8x16xf32>, vector<8x16xf32>, vector<8x8xf32> -> vector<8x8xf32>
    %20 = arith.negf %19 : vector<8x8xf32>
    %21 = math.exp %20 : vector<8x8xf32>
    %cst_14 = arith.constant 1.000000e+00 : f32
    %22 = vector.broadcast %cst_14 : f32 to vector<8x8xf32>
    %23 = arith.addf %22, %21 : vector<8x8xf32>
    %24 = arith.divf %22, %23 : vector<8x8xf32>
    %c0_15 = arith.constant 0 : index
    %c0_16 = arith.constant 0 : index
    %c0_17 = arith.constant 0 : index
    %25 = vector.load %arg6[%c0_15, %c0_16, %c0_17] : memref<1x8x8xf32, #tpu.memory_space<vmem>>, vector<1x8x8xf32>
    %26 = vector.shape_cast %25 : vector<1x8x8xf32> to vector<8x8xf32>
    %27 = vector.shape_cast %24 : vector<8x8xf32> to vector<1x8x8xf32>
    tpu.vector_store %arg6[%c0_15, %c0_16, %c0_17], %27 {strides = array<i32>} : memref<1x8x8xf32, #tpu.memory_space<vmem>>, vector<1x8x8xf32>,
    return
  }
  func.func @transform_0(%arg0: i32) -> (i32, i32, i32) {
    %c0_i32 = arith.constant 0 : i32
    %c0_i32_0 = arith.constant 0 : i32
    %c0_i32_1 = arith.constant 0 : i32
    return %arg0, %c0_i32, %c0_i32_0 : i32, i32, i32
  }
  func.func @transform_1(%arg0: i32) -> (i32, i32) {
    %c0_i32 = arith.constant 0 : i32
    %c0_i32_0 = arith.constant 0 : i32
    %c0_i32_1 = arith.constant 0 : i32
    return %c0_i32, %c0_i32_0 : i32, i32
  }
  func.func @transform_2(%arg0: i32) -> (i32, i32) {
    %c0_i32 = arith.constant 0 : i32
    %c0_i32_0 = arith.constant 0 : i32
    %c0_i32_1 = arith.constant 0 : i32
    return %c0_i32, %c0_i32_0 : i32, i32
  }
  func.func @transform_3(%arg0: i32) -> (i32, i32) {
    %c0_i32 = arith.constant 0 : i32
    %c0_i32_0 = arith.constant 0 : i32
    %c0_i32_1 = arith.constant 0 : i32
    return %c0_i32, %c0_i32_0 : i32, i32
  }
  func.func @transform_4(%arg0: i32) -> (i32, i32) {
    %c0_i32 = arith.constant 0 : i32
    %c0_i32_0 = arith.constant 0 : i32
    %c0_i32_1 = arith.constant 0 : i32
    return %c0_i32, %c0_i32_0 : i32, i32
  }
  func.func @transform_5(%arg0: i32) -> (i32, i32, i32) {
    %c0_i32 = arith.constant 0 : i32
    %c0_i32_0 = arith.constant 0 : i32
    %c0_i32_1 = arith.constant 0 : i32
    return %arg0, %c0_i32, %c0_i32_0 : i32, i32, i32
  }
}

</mosaic_0001>

<llo_original>
// kernel: tpu_custom_call.1
$region0: #{tpu_custom_call.1}
  #allocation0 [shape = 'u32[]', space=smem, size = 0x4, offset = 0x4, fixed_abs, tag = 'smem constant byte address 0x4 - core index']
  #allocation1 [shape = 'u32[144,128]{1,0:T(1,128)}', space=vmem, size = 0x12000, scoped, tag = 'internal scratch']
  %s0 = inlined_call_operand.vmem [shape: f32[2,8,16], index: 0, kind: input, shape index: {}]
  %s1 = inlined_call_operand.vmem [shape: f32[16,32], index: 1, kind: input, shape index: {}]
  %s2 = inlined_call_operand.vmem [shape: f32[1,32], index: 2, kind: input, shape index: {}]
  %s3 = inlined_call_operand.vmem [shape: f32[32,16], index: 3, kind: input, shape index: {}]
  %s4 = inlined_call_operand.vmem [shape: f32[1,16], index: 4, kind: input, shape index: {}]
  %s5 = inlined_call_operand.hbm [shape: f32[2,8,8], index: 5, kind: output, shape index: {}]
  %s6 = sld [smem:[#allocation0]]
  $region53: #{tpu_custom_call.1} parent=0
    _
  %s8 = ssub.s32 1, %s6
  %s9 = scalar_select 0, %s8, %s6
  $region1: #{tpu_custom_call.1} parent=0
    #allocation2 [shape = 'u8[8192]{0}', space=vmem, size = 0x2000, scoped, tag = 'output window, operand 0']
    #allocation3 [shape = 's32[2]{0}', space=sflag, size = 0x8, scoped, tag = 'scoped memory for tpu_custom_call.1']
    %10 = vsyncpa [#allocation3], 0
    %s11 = scalar_lea.sflag [#allocation3], 1
    %12 = vsyncpa %s11, 0
    loop: start=0, step=1, limit=4
    $region2: #{tpu_custom_call.1} parent=1 // loop_pre_header
      _
    $region3: #{tpu_custom_call.1} parent=1 // loop_header
      %s14 = sphi 0, %s18
      %p15 = scmp.ge.s32.totalorder %s14, 4
      %s24 = sphi 0, %s26
      %s27 = sphi 0, %s24
      %s28 = sphi 0, %s27
      %s44 = sphi 0, %s28
      %s48 = sphi 0, %s48
      %s50 = sphi 0, %s48
      %s51 = sphi 0, %s50
      %s65 = sphi 0, %s51
      %s69 = sphi 0, %s69
      %s71 = sphi 0, %s69
      %s72 = sphi 0, %s71
      %s86 = sphi 0, %s72
      %s90 = sphi 0, %s90
      %s92 = sphi 0, %s90
      %s93 = sphi 0, %s92
      %s107 = sphi 0, %s93
      %s111 = sphi 0, %s111
      %s113 = sphi 0, %s111
      %s114 = sphi 0, %s113
      %s128 = sphi 0, %s114
      %s134 = sphi 0, %s136
      %s137 = sphi 0, %s134
      %s138 = sphi 0, %s137
      %s154 = sphi 0, %s138
    $region4: #{tpu_custom_call.1} parent=1 // loop_header_branch
      %17 = sbr.rel (%p15) target = $region8
    $region5: #{tpu_custom_call.1} parent=1 // loop_body
      %s19 = ssub.s32 %s14, 1
      %s20 = ssub.s32 %s14, 2
      %s21 = sadd.s32 %s14, 1
      %s22 = ssub.s32 %s14, %s21
      %p23 = scmp.eq.s32.totalorder %s22, 0
      %s25 = sadd.s32 %s24, 1
      %s26 = scalar_select %p23, %s24, %s25
      %p29 = pneg %p23
      %p30 = scmp.eq.s32.totalorder %s14, 1
      %p31 = por %p29, %p30
      %p32 = scmp.ne.s32.totalorder %s24, %s27
      %p33 = scmp.eq.s32.totalorder %s14, 0
      %p34 = por %p32, %p33
      %p35 = scmp.ne.s32.totalorder %s24, %s27
      %p36 = scmp.eq.s32.totalorder %s19, 1
      %p37 = por %p35, %p36
      %p38 = scmp.ne.s32.totalorder %s27, %s28
      %p39 = scmp.eq.s32.totalorder %s19, 0
      %p40 = por %p38, %p39
      %p41 = scmp.ne.s32.totalorder %s27, %s28
      %p42 = scmp.eq.s32.totalorder %s20, 1
      %p43 = por %p41, %p42
      %p45 = scmp.ne.s32.totalorder %s28, %s44
      %p46 = scmp.eq.s32.totalorder %s20, 0
      %p47 = por %p45, %p46
      %s49 = sadd.s32 %s48, 1
      %p52 = scmp.eq.s32.totalorder %s14, 1
      %p53 = scmp.ne.s32.totalorder %s48, %s50
      %p54 = scmp.eq.s32.totalorder %s14, 0
      %p55 = por %p53, %p54
      %p56 = scmp.ne.s32.totalorder %s48, %s50
      %p57 = scmp.eq.s32.totalorder %s19, 1
      %p58 = por %p56, %p57
      %p59 = scmp.ne.s32.totalorder %s50, %s51
      %p60 = scmp.eq.s32.totalorder %s19, 0
      %p61 = por %p59, %p60
      %p62 = scmp.ne.s32.totalorder %s50, %s51
      %p63 = scmp.eq.s32.totalorder %s20, 1
      %p64 = por %p62, %p63
      %p66 = scmp.ne.s32.totalorder %s51, %s65
      %p67 = scmp.eq.s32.totalorder %s20, 0
      %p68 = por %p66, %p67
      %s70 = sadd.s32 %s69, 1
      %p73 = scmp.eq.s32.totalorder %s14, 1
      %p74 = scmp.ne.s32.totalorder %s69, %s71
      %p75 = scmp.eq.s32.totalorder %s14, 0
      %p76 = por %p74, %p75
      %p77 = scmp.ne.s32.totalorder %s69, %s71
      %p78 = scmp.eq.s32.totalorder %s19, 1
      %p79 = por %p77, %p78
      %p80 = scmp.ne.s32.totalorder %s71, %s72
      %p81 = scmp.eq.s32.totalorder %s19, 0
      %p82 = por %p80, %p81
      %p83 = scmp.ne.s32.totalorder %s71, %s72
      %p84 = scmp.eq.s32.totalorder %s20, 1
      %p85 = por %p83, %p84
      %p87 = scmp.ne.s32.totalorder %s72, %s86
      %p88 = scmp.eq.s32.totalorder %s20, 0
      %p89 = por %p87, %p88
      %s91 = sadd.s32 %s90, 1
      %p94 = scmp.eq.s32.totalorder %s14, 1
      %p95 = scmp.ne.s32.totalorder %s90, %s92
      %p96 = scmp.eq.s32.totalorder %s14, 0
      %p97 = por %p95, %p96
      %p98 = scmp.ne.s32.totalorder %s90, %s92
      %p99 = scmp.eq.s32.totalorder %s19, 1
      %p100 = por %p98, %p99
      %p101 = scmp.ne.s32.totalorder %s92, %s93
      %p102 = scmp.eq.s32.totalorder %s19, 0
      %p103 = por %p101, %p102
      %p104 = scmp.ne.s32.totalorder %s92, %s93
      %p105 = scmp.eq.s32.totalorder %s20, 1
      %p106 = por %p104, %p105
      %p108 = scmp.ne.s32.totalorder %s93, %s107
      %p109 = scmp.eq.s32.totalorder %s20, 0
      %p110 = por %p108, %p109
      %s112 = sadd.s32 %s111, 1
      %p115 = scmp.eq.s32.totalorder %s14, 1
      %p116 = scmp.ne.s32.totalorder %s111, %s113
      %p117 = scmp.eq.s32.totalorder %s14, 0
      %p118 = por %p116, %p117
      %p119 = scmp.ne.s32.totalorder %s111, %s113
      %p120 = scmp.eq.s32.totalorder %s19, 1
      %p121 = por %p119, %p120
      %p122 = scmp.ne.s32.totalorder %s113, %s114
      %p123 = scmp.eq.s32.totalorder %s19, 0
      %p124 = por %p122, %p123
      %p125 = scmp.ne.s32.totalorder %s113, %s114
      %p126 = scmp.eq.s32.totalorder %s20, 1
      %p127 = por %p125, %p126
      %p129 = scmp.ne.s32.totalorder %s114, %s128
      %p130 = scmp.eq.s32.totalorder %s20, 0
      %p131 = por %p129, %p130
      %s132 = ssub.s32 %s14, %s21
      %p133 = scmp.eq.s32.totalorder %s132, 0
      %s135 = sadd.s32 %s134, 1
      %s136 = scalar_select %p133, %s134, %s135
      %p139 = pneg %p133
      %p140 = scmp.eq.s32.totalorder %s14, 1
      %p141 = por %p139, %p140
      %p142 = scmp.ne.s32.totalorder %s134, %s137
      %p143 = scmp.eq.s32.totalorder %s14, 0
      %p144 = por %p142, %p143
      %p145 = scmp.ne.s32.totalorder %s134, %s137
      %p146 = scmp.eq.s32.totalorder %s19, 1
      %p147 = por %p145, %p146
      %p148 = scmp.ne.s32.totalorder %s137, %s138
      %p149 = scmp.eq.s32.totalorder %s19, 0
      %p150 = por %p148, %p149
      %p151 = scmp.ne.s32.totalorder %s137, %s138
      %p152 = scmp.eq.s32.totalorder %s20, 1
      %p153 = por %p151, %p152
      %p155 = scmp.ne.s32.totalorder %s138, %s154
      %p156 = scmp.eq.s32.totalorder %s20, 0
      %p157 = por %p155, %p156
      %p158 = scmp.le.s32.totalorder 1, %s14
      %p159 = scmp.lt.s32.totalorder %s14, 3
      %p160 = pnand %p158, %p159
      %p161 = pneg %p160
      // Predicated region
      $region9: #{tpu_custom_call.1} parent=5 // pred_check
        _
      $region10: #{tpu_custom_call.1} parent=5 // pred_check_branch
        %163 = sbr.rel (%p160) target = $region12
      $region11: #{tpu_custom_call.1} parent=5 // pred_region
        %s164 = ssub.s32 %s14, 1
        // Predicated region
        $region13: #{tpu_custom_call.1} parent=11 // pred_check
          %p165 = pneg %p61
        $region14: #{tpu_custom_call.1} parent=11 // pred_check_branch
          %167 = sbr.rel (%p165) target = $region16
        $region15: #{tpu_custom_call.1} parent=11 // pred_region
          _
        $region16: #{tpu_custom_call.1} parent=11 // pred_fallthru
          _
        // Predicated region
        $region17: #{tpu_custom_call.1} parent=11 // pred_check
          %p168 = pneg %p82
        $region18: #{tpu_custom_call.1} parent=11 // pred_check_branch
          %170 = sbr.rel (%p168) target = $region20
        $region19: #{tpu_custom_call.1} parent=11 // pred_region
          _
        $region20: #{tpu_custom_call.1} parent=11 // pred_fallthru
          _
        // Predicated region
        $region21: #{tpu_custom_call.1} parent=11 // pred_check
          %p171 = pneg %p103
        $region22: #{tpu_custom_call.1} parent=11 // pred_check_branch
          %173 = sbr.rel (%p171) target = $region24
        $region23: #{tpu_custom_call.1} parent=11 // pred_region
          _
        $region24: #{tpu_custom_call.1} parent=11 // pred_fallthru
          _
        // Predicated region
        $region25: #{tpu_custom_call.1} parent=11 // pred_check
          %p174 = pneg %p124
        $region26: #{tpu_custom_call.1} parent=11 // pred_check_branch
          %176 = sbr.rel (%p174) target = $region28
        $region27: #{tpu_custom_call.1} parent=11 // pred_region
          _
        $region28: #{tpu_custom_call.1} parent=11 // pred_fallthru
          _
      $region12: #{tpu_custom_call.1} parent=5 // pred_fallthru
        _
      %p177 = scmp.lt.s32.totalorder %s14, 2
      // Predicated region
      $region29: #{tpu_custom_call.1} parent=5 // pred_check
        %p178 = pneg %p177
      $region30: #{tpu_custom_call.1} parent=5 // pred_check_branch
        %180 = sbr.rel (%p178) target = $region32
      $region31: #{tpu_custom_call.1} parent=5 // pred_region
        // Predicated region
        $region33: #{tpu_custom_call.1} parent=31 // pred_check
          %p181 = pneg %p34
        $region34: #{tpu_custom_call.1} parent=31 // pred_check_branch
          %183 = sbr.rel (%p181) target = $region36
        $region35: #{tpu_custom_call.1} parent=31 // pred_region
          %p184 = scmp.lt.s32.totalorder %s14, 1
          %s185 = scalar_select %p184, %s14, 1
          %s186 = smul.addr %s185, 8
          %s187 = scalar_lea.vmem %s0, %s186
        $region36: #{tpu_custom_call.1} parent=31 // pred_fallthru
          _
      $region32: #{tpu_custom_call.1} parent=5 // pred_fallthru
        _
      %p188 = scmp.le.s32.totalorder 1, %s14
      %p189 = scmp.lt.s32.totalorder %s14, 3
      %p190 = pnand %p188, %p189
      %p191 = pneg %p190
      // Predicated region
      $region37: #{tpu_custom_call.1} parent=5 // pred_check
        _
      $region38: #{tpu_custom_call.1} parent=5 // pred_check_branch
        %193 = sbr.rel (%p190) target = $region40
      $region39: #{tpu_custom_call.1} parent=5 // pred_region
        %s194 = ssub.s32 %s14, 1
        %p195 = scmp.lt.s32.totalorder %s19, 1
        %s196 = scalar_select %p195, %s19, 1
        %s197 = smul.addr %s196, 8
        %s198 = scalar_lea.vmem %s0, %s197
        %p199 = pneg %p40
        %p200 = pneg %p37
        %p201 = pneg %p61
        %p202 = pneg %p58
        %p203 = pneg %p82
        %p204 = pneg %p79
        %p205 = pneg %p103
        %p206 = pneg %p100
        %p207 = pneg %p124
        %p208 = pneg %p121
        %p209 = pneg %p150
        %p210 = pneg %p147
        %s211 = sand.u32 %s137, 1
        %s212 = scalar_lea.sflag [#allocation3], %s211
        %s213 = sand.u32 %s137, 1
        %s214 = smul.addr %s213, 8
        %s215 = scalar_lea.vmem [#allocation2], %s214
        %p216 = scmp.lt.s32.totalorder %s19, 1
        %s217 = scalar_select %p216, %s19, 1
        %s218 = smul.addr %s217, 8
        %s219 = scalar_lea.vmem %s0, %s218
        %v220 = vld [vmem:[%s219] sm:$0xff]
        %v221 = vld [vmem:[%s1] sm:$0xff]
        %v222 = vld [vmem:[%s1 + $0x8] sm:$0xff]
        %v223 = vld [vmem:[%s2] sm:$0x1]
        %v224 = vld [vmem:[%s3] sm:$0xff]
        %v225 = vld [vmem:[%s3 + $0x8] sm:$0xff]
        %v226 = vld [vmem:[%s3 + $0x10] sm:$0xff]
        %v227 = vld [vmem:[%s3 + $0x18] sm:$0xff]
        %v228 = vld [vmem:[%s4] sm:$0x1]
        %v230 = vlaneseq
        %v231 = vshrl.u32 %v230, 7
        %v232 = vsub.s32 0, %v231
        %v233 = vrot.slane %v223, %v232
        %vm235 = vcmask 130048
        %v237 = vsel %vm235, %v220, 0
        %239 = vmatprep.subr.mxu0 0.0
        %240 = vmatpush1.msra.mxu0 0.0
        %241 = vmatprep.subr.mxu0 0.0
        %242 = vmatpush1.msra.mxu0 0.0
        %243 = vmatprep.subr.mxu0 0.0
        %244 = vmatpush1.msra.mxu0 0.0
        %245 = vmatprep.subr.mxu0 0.0
        %246 = vmatpush1.msra.mxu0 0.0
        %247 = vmatprep.subr.mxu0 0.0
        %248 = vmatpush1.msra.mxu0 0.0
        %249 = vmatprep.subr.mxu0 0.0
        %250 = vmatpush1.msra.mxu0 0.0
        %251 = vmatprep.subr.mxu0 0.0
        %252 = vmatpush1.msra.mxu0 0.0
        %253 = vmatprep.subr.mxu0 0.0
        %254 = vmatpush1.msra.mxu0 0.0
        %255 = vmatprep.subr.mxu0 0.0
        %256 = vmatpush1.msra.mxu0 0.0
        %257 = vmatprep.subr.mxu0 0.0
        %258 = vmatpush1.msra.mxu0 0.0
        %259 = vmatprep.subr.mxu0 0.0
        %260 = vmatpush1.msra.mxu0 0.0
        %261 = vmatprep.subr.mxu0 0.0
        %262 = vmatpush1.msra.mxu0 0.0
        %263 = vmatprep.subr.mxu0 0.0
        %264 = vmatpush1.msra.mxu0 0.0
        %265 = vmatprep.subr.mxu0 0.0
        %266 = vmatpush1.msra.mxu0 0.0
        %267 = vmatprep.subr.mxu0 0.0
        %268 = vmatpush1.msra.mxu0 %v222
        %269 = vmatprep.subr.mxu0 0.0
        %270 = vmatpush1.msra.mxu0 %v221
        %271 = vmatprep.subr.mxu0 0.0
        %272 = vmatpush2.msra.mxu0 0.0
        %273 = vmatprep.subr.mxu0 0.0
        %274 = vmatpush2.msra.mxu0 0.0
        %275 = vmatprep.subr.mxu0 0.0
        %276 = vmatpush2.msra.mxu0 0.0
        %277 = vmatprep.subr.mxu0 0.0
        %278 = vmatpush2.msra.mxu0 0.0
        %279 = vmatprep.subr.mxu0 0.0
        %280 = vmatpush2.msra.mxu0 0.0
        %281 = vmatprep.subr.mxu0 0.0
        %282 = vmatpush2.msra.mxu0 0.0
        %283 = vmatprep.subr.mxu0 0.0
        %284 = vmatpush2.msra.mxu0 0.0
        %285 = vmatprep.subr.mxu0 0.0
        %286 = vmatpush2.msra.mxu0 0.0
        %287 = vmatprep.subr.mxu0 0.0
        %288 = vmatpush2.msra.mxu0 0.0
        %289 = vmatprep.subr.mxu0 0.0
        %290 = vmatpush2.msra.mxu0 0.0
        %291 = vmatprep.subr.mxu0 0.0
        %292 = vmatpush2.msra.mxu0 0.0
        %293 = vmatprep.subr.mxu0 0.0
        %294 = vmatpush2.msra.mxu0 0.0
        %295 = vmatprep.subr.mxu0 0.0
        %296 = vmatpush2.msra.mxu0 0.0
        %297 = vmatprep.subr.mxu0 0.0
        %298 = vmatpush2.msra.mxu0 0.0
        %299 = vmatprep.subr.mxu0 0.0
        %300 = vmatpush2.msra.mxu0 0.0
        %301 = vmatprep.subr.mxu0 0.0
        %302 = vmatpush2.msra.mxu0 0.0
        %303 = vmatprep.mubr.f32.mxu0 0.0
        %304 = vmatmul.mubr.f32.gmra.mxu0 %v237
        %v305 = vpop.f32.mrf.mxu0
        %v306 = vadd.f32 %v233, %v305
        %v307 = vpop.f32.mrf.mxu0
        %308 = vdwg.mxu0
        %v309 = vmax.f32 %v306, 0.0
        %v311 = vlaneseq
        %v312 = vshrl.u32 %v311, 7
        %v313 = vsub.s32 0, %v312
        %v314 = vrot.slane %v228, %v313
        %vm316 = vcmask 261120
        %v318 = vsel %vm316, %v309, 0
        %320 = vmatprep.subr.mxu0 0.0
        %321 = vmatpush1.msra.mxu0 0.0
        %322 = vmatprep.subr.mxu0 0.0
        %323 = vmatpush1.msra.mxu0 0.0
        %324 = vmatprep.subr.mxu0 0.0
        %325 = vmatpush1.msra.mxu0 0.0
        %326 = vmatprep.subr.mxu0 0.0
        %327 = vmatpush1.msra.mxu0 0.0
        %328 = vmatprep.subr.mxu0 0.0
        %329 = vmatpush1.msra.mxu0 0.0
        %330 = vmatprep.subr.mxu0 0.0
        %331 = vmatpush1.msra.mxu0 0.0
        %332 = vmatprep.subr.mxu0 0.0
        %333 = vmatpush1.msra.mxu0 0.0
        %334 = vmatprep.subr.mxu0 0.0
        %335 = vmatpush1.msra.mxu0 0.0
        %336 = vmatprep.subr.mxu0 0.0
        %337 = vmatpush1.msra.mxu0 0.0
        %338 = vmatprep.subr.mxu0 0.0
        %339 = vmatpush1.msra.mxu0 0.0
        %340 = vmatprep.subr.mxu0 0.0
        %341 = vmatpush1.msra.mxu0 0.0
        %342 = vmatprep.subr.mxu0 0.0
        %343 = vmatpush1.msra.mxu0 0.0
        %344 = vmatprep.subr.mxu0 0.0
        %345 = vmatpush1.msra.mxu0 %v227
        %346 = vmatprep.subr.mxu0 0.0
        %347 = vmatpush1.msra.mxu0 %v226
        %348 = vmatprep.subr.mxu0 0.0
        %349 = vmatpush1.msra.mxu0 %v225
        %350 = vmatprep.subr.mxu0 0.0
        %351 = vmatpush1.msra.mxu0 %v224
        %352 = vmatprep.subr.mxu0 0.0
        %353 = vmatpush2.msra.mxu0 0.0
        %354 = vmatprep.subr.mxu0 0.0
        %355 = vmatpush2.msra.mxu0 0.0
        %356 = vmatprep.subr.mxu0 0.0
        %357 = vmatpush2.msra.mxu0 0.0
        %358 = vmatprep.subr.mxu0 0.0
        %359 = vmatpush2.msra.mxu0 0.0
        %360 = vmatprep.subr.mxu0 0.0
        %361 = vmatpush2.msra.mxu0 0.0
        %362 = vmatprep.subr.mxu0 0.0
        %363 = vmatpush2.msra.mxu0 0.0
        %364 = vmatprep.subr.mxu0 0.0
        %365 = vmatpush2.msra.mxu0 0.0
        %366 = vmatprep.subr.mxu0 0.0
        %367 = vmatpush2.msra.mxu0 0.0
        %368 = vmatprep.subr.mxu0 0.0
        %369 = vmatpush2.msra.mxu0 0.0
        %370 = vmatprep.subr.mxu0 0.0
        %371 = vmatpush2.msra.mxu0 0.0
        %372 = vmatprep.subr.mxu0 0.0
        %373 = vmatpush2.msra.mxu0 0.0
        %374 = vmatprep.subr.mxu0 0.0
        %375 = vmatpush2.msra.mxu0 0.0
        %376 = vmatprep.subr.mxu0 0.0
        %377 = vmatpush2.msra.mxu0 0.0
        %378 = vmatprep.subr.mxu0 0.0
        %379 = vmatpush2.msra.mxu0 0.0
        %380 = vmatprep.subr.mxu0 0.0
        %381 = vmatpush2.msra.mxu0 0.0
        %382 = vmatprep.subr.mxu0 0.0
        %383 = vmatpush2.msra.mxu0 0.0
        %384 = vmatprep.mubr.f32.mxu0 0.0
        %385 = vmatmul.mubr.f32.gmra.mxu0 %v318
        %v386 = vpop.f32.mrf.mxu0
        %v387 = vadd.f32 %v314, %v386
        %v388 = vpop.f32.mrf.mxu0
        %389 = vdwg.mxu0
        %v390 = vxor.u32 %v387, 2147483648
        %v391 = vmul.f32 %v390, 1.442695
        %v392 = vpow.pop %v391
        %v393 = vadd.f32 %v392, 1.0
        %v394 = vrcp.pop %v393
        %v395 = vmul.f32 1.0, %v394
        %v397 = vsel %vm235, %v395, 0
        %399 = vmatprep.subr.mxu0 0.0
        %400 = vmatpush1.xpose.msra.mxu0 0.0
        %401 = vmatprep.subr.mxu0 0.0
        %402 = vmatpush1.xpose.msra.mxu0 0.0
        %403 = vmatprep.subr.mxu0 0.0
        %404 = vmatpush1.xpose.msra.mxu0 0.0
        %405 = vmatprep.subr.mxu0 0.0
        %406 = vmatpush1.xpose.msra.mxu0 0.0
        %407 = vmatprep.subr.mxu0 0.0
        %408 = vmatpush1.xpose.msra.mxu0 0.0
        %409 = vmatprep.subr.mxu0 0.0
        %410 = vmatpush1.xpose.msra.mxu0 0.0
        %411 = vmatprep.subr.mxu0 0.0
        %412 = vmatpush1.xpose.msra.mxu0 0.0
        %413 = vmatprep.subr.mxu0 0.0
        %414 = vmatpush1.xpose.msra.mxu0 0.0
        %415 = vmatprep.subr.mxu0 0.0
        %416 = vmatpush1.xpose.msra.mxu0 0.0
        %417 = vmatprep.subr.mxu0 0.0
        %418 = vmatpush1.xpose.msra.mxu0 0.0
        %419 = vmatprep.subr.mxu0 0.0
        %420 = vmatpush1.xpose.msra.mxu0 0.0
        %421 = vmatprep.subr.mxu0 0.0
        %422 = vmatpush1.xpose.msra.mxu0 0.0
        %423 = vmatprep.subr.mxu0 0.0
        %424 = vmatpush1.xpose.msra.mxu0 0.0
        %425 = vmatprep.subr.mxu0 0.0
        %426 = vmatpush1.xpose.msra.mxu0 0.0
        %427 = vmatprep.subr.mxu0 0.0
        %428 = vmatpush1.xpose.msra.mxu0 0.0
        %429 = vmatprep.subr.mxu0 0.0
        %430 = vmatpush1.xpose.msra.mxu0 %v397
        %431 = vmatprep.subr.mxu0 0.0
        %432 = vmatpush2.xpose.msra.mxu0 0.0
        %433 = vmatprep.subr.mxu0 0.0
        %434 = vmatpush2.xpose.msra.mxu0 0.0
        %435 = vmatprep.subr.mxu0 0.0
        %436 = vmatpush2.xpose.msra.mxu0 0.0
        %437 = vmatprep.subr.mxu0 0.0
        %438 = vmatpush2.xpose.msra.mxu0 0.0
        %439 = vmatprep.subr.mxu0 0.0
        %440 = vmatpush2.xpose.msra.mxu0 0.0
        %441 = vmatprep.subr.mxu0 0.0
        %442 = vmatpush2.xpose.msra.mxu0 0.0
        %443 = vmatprep.subr.mxu0 0.0
        %444 = vmatpush2.xpose.msra.mxu0 0.0
        %445 = vmatprep.subr.mxu0 0.0
        %446 = vmatpush2.xpose.msra.mxu0 0.0
        %447 = vmatprep.subr.mxu0 0.0
        %448 = vmatpush2.xpose.msra.mxu0 0.0
        %449 = vmatprep.subr.mxu0 0.0
        %450 = vmatpush2.xpose.msra.mxu0 0.0
        %451 = vmatprep.subr.mxu0 0.0
        %452 = vmatpush2.xpose.msra.mxu0 0.0
        %453 = vmatprep.subr.mxu0 0.0
        %454 = vmatpush2.xpose.msra.mxu0 0.0
        %455 = vmatprep.subr.mxu0 0.0
        %456 = vmatpush2.xpose.msra.mxu0 0.0
        %457 = vmatprep.subr.mxu0 0.0
        %458 = vmatpush2.xpose.msra.mxu0 0.0
        %459 = vmatprep.subr.mxu0 0.0
        %460 = vmatpush2.xpose.msra.mxu0 0.0
        %461 = vmatprep.subr.mxu0 0.0
        %462 = vmatpush2.xpose.msra.mxu0 0.0
        %463 = vmatprep.mubr.f32.mxu0 0.0
        %464 = vmatmul.mubr.f32.gmra.mxu0 %v397
        %v465 = vpop.f32.mrf.mxu0
        %v466 = vadd.f32 0.0, %v465
        %v467 = vpop.f32.mrf.mxu0
        %468 = vdwg.mxu0
        %v469 = vxor.u32 %v466, 2147483648
        %v470 = vmul.f32 %v469, 1.442695
        %v471 = vpow.pop %v470
        %v472 = vadd.f32 %v471, 1.0
        %v473 = vrcp.pop %v472
        %v474 = vmul.f32 1.0, %v473
        %vm475 = vcmask 64512
        %476 = vst.msk [vmem:[%s215] sm:$0xff] %vm475, %v474
        %s477 = sand.u32 %s137, 1
        %s478 = scalar_lea.sflag [#allocation3], %s477
        %s479 = sand.u32 %s137, 1
        %s480 = smul.addr %s479, 8
        %s481 = scalar_lea.vmem [#allocation2], %s480
        // Predicated region
        $region41: #{tpu_custom_call.1} parent=39 // pred_check
          %p482 = pneg %p147
        $region42: #{tpu_custom_call.1} parent=39 // pred_check_branch
          %484 = sbr.rel (%p482) target = $region44
        $region43: #{tpu_custom_call.1} parent=39 // pred_region
          %s486 = ssub.s32 128, 128
          %487 = vsyncadd %s478, %s486
          %s488 = smul.addr %s19, 128
          %s489 = scalar_lea.hbm %s5, %s488
          %s491 = sshll.u32 %s481, 4
          %s492 = int_to_ptr.vmem [resolvable:$true] %s491
          %494 = dma.vmem_to_hbm [thread:$0]  %s492, 128, %s489, %s478
        $region44: #{tpu_custom_call.1} parent=39 // pred_fallthru
          _
      $region40: #{tpu_custom_call.1} parent=5 // pred_fallthru
        _
      %p495 = scmp.le.s32.totalorder 2, %s14
      // Predicated region
      $region45: #{tpu_custom_call.1} parent=5 // pred_check
        %p496 = pneg %p495
      $region46: #{tpu_custom_call.1} parent=5 // pred_check_branch
        %498 = sbr.rel (%p496) target = $region48
      $region47: #{tpu_custom_call.1} parent=5 // pred_region
        %s499 = ssub.s32 %s14, 2
        // Predicated region
        $region49: #{tpu_custom_call.1} parent=47 // pred_check
          %p500 = pneg %p153
        $region50: #{tpu_custom_call.1} parent=47 // pred_check_branch
          %502 = sbr.rel (%p500) target = $region52
        $region51: #{tpu_custom_call.1} parent=47 // pred_region
          %s503 = sand.u32 %s138, 1
          %s504 = scalar_lea.sflag [#allocation3], %s503
          %s505 = sand.u32 %s138, 1
          %s506 = smul.addr %s505, 8
          %s507 = scalar_lea.vmem [#allocation2], %s506
          %508 = dma.done %s504, 128
        $region52: #{tpu_custom_call.1} parent=47 // pred_fallthru
          _
      $region48: #{tpu_custom_call.1} parent=5 // pred_fallthru
        _
    $region6: #{tpu_custom_call.1} parent=1 // loop_footer
      %s18 = sadd.s32 1, %s14
    $region7: #{tpu_custom_call.1} parent=1 // loop_footer_branch
      %13 = sbr.rel target = $region3
    $region8: #{tpu_custom_call.1} parent=1 // loop_exit
      _
    %509 = vsyncpa [#allocation3], 1
    %s510 = scalar_lea.sflag [#allocation3], 1
    %511 = vsyncpa %s510, 1

</llo_original>
